<compile_context>
chip_gen: v6e
topology: v6e:2x2x1
jax: 0.10.0
libtpu: 0.0.40
codegen_flags: <defaults>
</compile_context>

<pallas_src>
import functools

import numpy as np

import jax
import jax.numpy as jnp
from jax.experimental import pallas as pl
from jax.experimental.pallas import tpu as pltpu


def _spt_kernel(rc_ref, x_ref, o_ref, *, H, W, s):
    # rc_ref: (2, 1, P) int32  -- row / col index of each flattened position
    # x_ref : (Nt, Ct, P)      -- input tile, spatial dims flattened (lane-dense)
    # o_ref : (Nt, 5, Ct, P)   -- [orig, lu, ru, lb, rb] planes
    P = H * W
    row = rc_ref[0]              # (1, P)
    col = rc_ref[1]              # (1, P)

    # Single load of the input block; reused by all five output planes.
    xv = x_ref[...]
    zero = jnp.zeros((), dtype=xv.dtype)

    # Plane 0: identity copy.
    o_ref[:, 0] = xv

    # (flat shift, validity mask): out[p] = x[p - shift] where valid, else 0.
    planes = (
        (s * W + s, (row >= s) & (col >= s)),             # lu: x[h-s, w-s]
        (s * W - s, (row >= s) & (col < W - s)),          # ru: x[h-s, w+s]
        (-(s * W - s), (row < H - s) & (col >= s)),       # lb: x[h+s, w-s]
        (-(s * W + s), (row < H - s) & (col < W - s)),    # rb: x[h+s, w+s]
    )
    for k, (shift, mask) in enumerate(planes):
        sh = shift % P
        rolled = xv if sh == 0 else pltpu.roll(xv, sh, axis=2)  # jnp.roll semantics
        o_ref[:, k + 1] = jnp.where(mask, rolled, zero)


def patch_shifting(x, patch_size):
    """Pallas TPU implementation of PatchShifting.forward. x: (N, C, H, W)."""
    N, C, H, W = x.shape
    s = int(patch_size * (1 / 2))
    if s < 1:
        # Degenerate case (patch_size <= 1) also breaks the PyTorch reference.
        raise ValueError("PatchShifting requires patch_size >= 2 (shift >= 1)")
    P = H * W
    itemsize = jnp.dtype(x.dtype).itemsize

    # Free, contiguous reshape: last dim becomes H*W (lane-dense in-kernel).
    x2 = x.reshape(N, C, P)

    # Static row/col index of every flattened spatial position (host-built).
    rows = np.repeat(np.arange(H, dtype=np.int32), W)
    cols = np.tile(np.arange(W, dtype=np.int32), H)
    rc = jnp.asarray(np.stack([rows, cols])[:, None, :])   # (2, 1, P) int32

    # ---- Tile sizing -------------------------------------------------------
    # Dtype-aware sublane quantum for the channel (second-to-last) tile dim.
    if itemsize >= 4:
        quantum = 8
    elif itemsize == 2:
        quantum = 16
    else:
        quantum = 32

    TARGET = 6 * 1024 * 1024      # per-step (1x read + 5x write) byte budget
    MIN_STEP = 1 * 1024 * 1024    # don't split steps below this (v7x 2-TC split)

    per_c = 6 * P * itemsize      # bytes moved per (n, c) plane per step
    per_n = per_c * C

    if per_n <= TARGET:
        # Whole channel dim per step; batch as many N as fit the budget.
        Nt = max(1, min(N, TARGET // per_n))
        Ct = C
    else:
        # One batch element per step; tile channels down (quantum-aligned).
        Nt = 1
        budget_ct = max(1, TARGET // per_c)
        if C <= quantum or budget_ct >= C:
            Ct = C
        else:
            Ct = max(quantum, (min(budget_ct, C) // quantum) * quantum)
            # Prefer a Ct that divides C (avoids padded boundary blocks).
            for d in range(Ct, quantum - 1, -quantum):
                if C % d == 0:
                    Ct = d
                    break
        # TODO(synk): if a single (1, min-Ct, H*W) plane still exceeds VMEM
        # (huge H*W with tiny C), add an H-row tile with an s-row halo.

    # Guarantee >= 2 grid steps along a parallel axis so both v7x TensorCores
    # get work, as long as each step stays >= ~1 MiB.
    if pl.cdiv(N, Nt) * pl.cdiv(C, Ct) == 1:
        if Nt > 1 and per_n * ((Nt + 1) // 2) >= MIN_STEP:
            Nt = (Nt + 1) // 2
        elif Ct > quantum:
            half = -(-((Ct + 1) // 2) // quantum) * quantum
            if half < Ct and per_c * half >= MIN_STEP:
                Ct = half

    # Explicit scoped-VMEM limit: double-buffered (in + out) blocks + rc +
    # margin for the roll/select intermediates.
    in_block = Nt * Ct * P * itemsize
    out_block = 5 * in_block
    step_bytes = in_block + out_block
    rc_bytes = 2 * 8 * P * 4                       # (2,1,P) padded to 8 sublanes
    vmem_needed = 2 * (step_bytes + rc_bytes) + 4 * in_block + (1 << 20)
    vmem_limit = int(min(max(vmem_needed, 16 * 1024 * 1024), 64 * 1024 * 1024))

    grid = (pl.cdiv(N, Nt), pl.cdiv(C, Ct))
    kernel = functools.partial(_spt_kernel, H=H, W=W, s=s)

    out5 = pl.pallas_call(
        kernel,
        out_shape=jax.ShapeDtypeStruct((N, 5, C, P), x.dtype),
        grid_spec=pltpu.PrefetchScalarGridSpec(
            num_scalar_prefetch=0,
            grid=grid,
            in_specs=[
                pl.BlockSpec((2, 1, P), lambda n, c: (0, 0, 0)),     # rc (const)
                pl.BlockSpec((Nt, Ct, P), lambda n, c: (n, c, 0)),   # x tile
            ],
            out_specs=pl.BlockSpec((Nt, 5, Ct, P), lambda n, c: (n, 0, c, 0)),
        ),
        compiler_params=pltpu.CompilerParams(
            dimension_semantics=("parallel", "parallel"),
            vmem_limit_bytes=vmem_limit,
        ),
        cost_estimate=pl.CostEstimate(
            flops=0,
            transcendentals=0,
            bytes_accessed=int(6 * N * C * P * itemsize),
        ),
    )(rc, x2)

    # (N, 5, C, H*W) -> (N, 5*C, H, W); matches torch.cat([x, lu, ru, lb, rb], 1).
    return out5.reshape(N, 5 * C, H, W)


def _reference(x, patch_size):
    """Pure-JAX reference mirroring the PyTorch code exactly."""
    s = int(patch_size * (1 / 2))
    xp = jnp.pad(x, ((0, 0), (0, 0), (s, s), (s, s)))
    x_lu = xp[:, :, : -s * 2, : -s * 2]
    x_ru = xp[:, :, : -s * 2, s * 2:]
    x_lb = xp[:, :, s * 2:, : -s * 2]
    x_rb = xp[:, :, s * 2:, s * 2:]
    return jnp.concatenate([x, x_lu, x_ru, x_lb, x_rb], axis=1)


if __name__ == "__main__":
    key = jax.random.PRNGKey(0)
    N, C, H, W = 2, 4, 16, 16
    patch_size = 4  # -> shift = 2

    x = jax.random.normal(key, (N, C, H, W), dtype=jnp.float32)

    out = patch_shifting(x, patch_size)
    out = jax.block_until_ready(out)

    ref = _reference(x, patch_size)
    assert out.shape == (N, 5 * C, H, W), out.shape
    assert out.dtype == x.dtype
    assert jnp.allclose(out, ref, atol=0.0, rtol=0.0), "mismatch vs reference"

    print("KERNEL_OK")
</pallas_src>

<mosaic_0001>
module attributes {stable_mosaic.version = 11 : i64} {
  func.func @_spt_kernel(%arg0: i32, %arg1: i32, %arg2: memref<2x1x256xi32, #tpu.memory_space<vmem>>, %arg3: memref<2x4x256xf32, #tpu.memory_space<vmem>>, %arg4: memref<2x5x4x256xf32, #tpu.memory_space<vmem>>) attributes {dimension_semantics = [#tpu.dimension_semantics<parallel>, #tpu.dimension_semantics<parallel>], iteration_bounds = array<i64: 1, 1>, scalar_prefetch = 0 : i64, scratch_operands = 0 : i64, tpu.core_type = #tpu.core_type<tc>, window_params = [{pipeline_mode = #tpu.pipeline_mode<synchronous>, transform_indices = @transform_0, window_bounds = array<i64: 2, 1, 256>}, {transform_indices = @transform_1, window_bounds = array<i64: 2, 4, 256>}, {transform_indices = @transform_2, window_bounds = array<i64: 2, 5, 4, 256>}]} {
    %c0 = arith.constant 0 : index
    %c0_0 = arith.constant 0 : index
    %c0_1 = arith.constant 0 : index
    %0 = vector.load %arg2[%c0, %c0_0, %c0_1] : memref<2x1x256xi32, #tpu.memory_space<vmem>>, vector<1x1x256xi32>
    %1 = vector.shape_cast %0 : vector<1x1x256xi32> to vector<1x256xi32>
    %c1 = arith.constant 1 : index
    %c0_2 = arith.constant 0 : index
    %c0_3 = arith.constant 0 : index
    %2 = vector.load %arg2[%c1, %c0_2, %c0_3] : memref<2x1x256xi32, #tpu.memory_space<vmem>>, vector<1x1x256xi32>
    %3 = vector.shape_cast %2 : vector<1x1x256xi32> to vector<1x256xi32>
    %c0_4 = arith.constant 0 : index
    %c0_5 = arith.constant 0 : index
    %c0_6 = arith.constant 0 : index
    %4 = vector.load %arg3[%c0_4, %c0_5, %c0_6] : memref<2x4x256xf32, #tpu.memory_space<vmem>>, vector<2x4x256xf32>
    %c0_7 = arith.constant 0 : index
    %c0_8 = arith.constant 0 : index
    %c0_9 = arith.constant 0 : index
    %c0_10 = arith.constant 0 : index
    %5 = vector.load %arg4[%c0_7, %c0_8, %c0_9, %c0_10] : memref<2x5x4x256xf32, #tpu.memory_space<vmem>>, vector<2x1x4x256xf32>
    %6 = vector.shape_cast %5 : vector<2x1x4x256xf32> to vector<2x4x256xf32>
    %7 = vector.shape_cast %4 : vector<2x4x256xf32> to vector<2x1x4x256xf32>
    tpu.vector_store %arg4[%c0_7, %c0_8, %c0_9, %c0_10], %7 {strides = array<i32>} : memref<2x5x4x256xf32, #tpu.memory_space<vmem>>, vector<2x1x4x256xf32>,
    %c2_i32 = arith.constant 2 : i32
    %8 = vector.broadcast %c2_i32 : i32 to vector<1x256xi32>
    %9 = arith.cmpi sge, %1, %8 : vector<1x256xi32>
    %c2_i32_11 = arith.constant 2 : i32
    %10 = vector.broadcast %c2_i32_11 : i32 to vector<1x256xi32>
    %11 = arith.cmpi sge, %3, %10 : vector<1x256xi32>
    %12 = arith.andi %9, %11 : vector<1x256xi1>
    %c2_i32_12 = arith.constant 2 : i32
    %13 = vector.broadcast %c2_i32_12 : i32 to vector<1x256xi32>
    %14 = arith.cmpi sge, %1, %13 : vector<1x256xi32>
    %c14_i32 = arith.constant 14 : i32
    %15 = vector.broadcast %c14_i32 : i32 to vector<1x256xi32>
    %16 = arith.cmpi slt, %3, %15 : vector<1x256xi32>
    %17 = arith.andi %14, %16 : vector<1x256xi1>
    %c14_i32_13 = arith.constant 14 : i32
    %18 = vector.broadcast %c14_i32_13 : i32 to vector<1x256xi32>
    %19 = arith.cmpi slt, %1, %18 : vector<1x256xi32>
    %c2_i32_14 = arith.constant 2 : i32
    %20 = vector.broadcast %c2_i32_14 : i32 to vector<1x256xi32>
    %21 = arith.cmpi sge, %3, %20 : vector<1x256xi32>
    %22 = arith.andi %19, %21 : vector<1x256xi1>
    %c14_i32_15 = arith.constant 14 : i32
    %23 = vector.broadcast %c14_i32_15 : i32 to vector<1x256xi32>
    %24 = arith.cmpi slt, %1, %23 : vector<1x256xi32>
    %c14_i32_16 = arith.constant 14 : i32
    %25 = vector.broadcast %c14_i32_16 : i32 to vector<1x256xi32>
    %26 = arith.cmpi slt, %3, %25 : vector<1x256xi32>
    %27 = arith.andi %24, %26 : vector<1x256xi1>
    %c34_i32 = arith.constant 34 : i32
    %28 = tpu.dynamic_rotate %4 by %c34_i32 dim 2 : vector<2x4x256xf32>, i32 -> vector<2x4x256xf32>
    %cst = arith.constant 0.000000e+00 : f32
    %29 = vector.shape_cast %12 : vector<1x256xi1> to vector<1x1x256xi1>
    %30 = vector.broadcast %29 : vector<1x1x256xi1> to vector<2x4x256xi1>
    %31 = vector.broadcast %cst : f32 to vector<2x4x256xf32>
    %32 = arith.select %30, %28, %31 : vector<2x4x256xi1>, vector<2x4x256xf32>
    %c0_17 = arith.constant 0 : index
    %c1_18 = arith.constant 1 : index
    %c0_19 = arith.constant 0 : index
    %c0_20 = arith.constant 0 : index
    %33 = vector.load %arg4[%c0_17, %c1_18, %c0_19, %c0_20] : memref<2x5x4x256xf32, #tpu.memory_space<vmem>>, vector<2x1x4x256xf32>
    %34 = vector.shape_cast %33 : vector<2x1x4x256xf32> to vector<2x4x256xf32>
    %35 = vector.shape_cast %32 : vector<2x4x256xf32> to vector<2x1x4x256xf32>
    tpu.vector_store %arg4[%c0_17, %c1_18, %c0_19, %c0_20], %35 {strides = array<i32>} : memref<2x5x4x256xf32, #tpu.memory_space<vmem>>, vector<2x1x4x256xf32>,
    %c30_i32 = arith.constant 30 : i32
    %36 = tpu.dynamic_rotate %4 by %c30_i32 dim 2 : vector<2x4x256xf32>, i32 -> vector<2x4x256xf32>
    %cst_21 = arith.constant 0.000000e+00 : f32
    %37 = vector.shape_cast %17 : vector<1x256xi1> to vector<1x1x256xi1>
    %38 = vector.broadcast %37 : vector<1x1x256xi1> to vector<2x4x256xi1>
    %39 = vector.broadcast %cst_21 : f32 to vector<2x4x256xf32>
    %40 = arith.select %38, %36, %39 : vector<2x4x256xi1>, vector<2x4x256xf32>
    %c0_22 = arith.constant 0 : index
    %c2 = arith.constant 2 : index
    %c0_23 = arith.constant 0 : index
    %c0_24 = arith.constant 0 : index
    %41 = vector.load %arg4[%c0_22, %c2, %c0_23, %c0_24] : memref<2x5x4x256xf32, #tpu.memory_space<vmem>>, vector<2x1x4x256xf32>
    %42 = vector.shape_cast %41 : vector<2x1x4x256xf32> to vector<2x4x256xf32>
    %43 = vector.shape_cast %40 : vector<2x4x256xf32> to vector<2x1x4x256xf32>
    tpu.vector_store %arg4[%c0_22, %c2, %c0_23, %c0_24], %43 {strides = array<i32>} : memref<2x5x4x256xf32, #tpu.memory_space<vmem>>, vector<2x1x4x256xf32>,
    %c226_i32 = arith.constant 226 : i32
    %44 = tpu.dynamic_rotate %4 by %c226_i32 dim 2 : vector<2x4x256xf32>, i32 -> vector<2x4x256xf32>
    %cst_25 = arith.constant 0.000000e+00 : f32
    %45 = vector.shape_cast %22 : vector<1x256xi1> to vector<1x1x256xi1>
    %46 = vector.broadcast %45 : vector<1x1x256xi1> to vector<2x4x256xi1>
    %47 = vector.broadcast %cst_25 : f32 to vector<2x4x256xf32>
    %48 = arith.select %46, %44, %47 : vector<2x4x256xi1>, vector<2x4x256xf32>
    %c0_26 = arith.constant 0 : index
    %c3 = arith.constant 3 : index
    %c0_27 = arith.constant 0 : index
    %c0_28 = arith.constant 0 : index
    %49 = vector.load %arg4[%c0_26, %c3, %c0_27, %c0_28] : memref<2x5x4x256xf32, #tpu.memory_space<vmem>>, vector<2x1x4x256xf32>
    %50 = vector.shape_cast %49 : vector<2x1x4x256xf32> to vector<2x4x256xf32>
    %51 = vector.shape_cast %48 : vector<2x4x256xf32> to vector<2x1x4x256xf32>
    tpu.vector_store %arg4[%c0_26, %c3, %c0_27, %c0_28], %51 {strides = array<i32>} : memref<2x5x4x256xf32, #tpu.memory_space<vmem>>, vector<2x1x4x256xf32>,
    %c222_i32 = arith.constant 222 : i32
    %52 = tpu.dynamic_rotate %4 by %c222_i32 dim 2 : vector<2x4x256xf32>, i32 -> vector<2x4x256xf32>
    %cst_29 = arith.constant 0.000000e+00 : f32
    %53 = vector.shape_cast %27 : vector<1x256xi1> to vector<1x1x256xi1>
    %54 = vector.broadcast %53 : vector<1x1x256xi1> to vector<2x4x256xi1>
    %55 = vector.broadcast %cst_29 : f32 to vector<2x4x256xf32>
    %56 = arith.select %54, %52, %55 : vector<2x4x256xi1>, vector<2x4x256xf32>
    %c0_30 = arith.constant 0 : index
    %c4 = arith.constant 4 : index
    %c0_31 = arith.constant 0 : index
    %c0_32 = arith.constant 0 : index
    %57 = vector.load %arg4[%c0_30, %c4, %c0_31, %c0_32] : memref<2x5x4x256xf32, #tpu.memory_space<vmem>>, vector<2x1x4x256xf32>
    %58 = vector.shape_cast %57 : vector<2x1x4x256xf32> to vector<2x4x256xf32>
    %59 = vector.shape_cast %56 : vector<2x4x256xf32> to vector<2x1x4x256xf32>
    tpu.vector_store %arg4[%c0_30, %c4, %c0_31, %c0_32], %59 {strides = array<i32>} : memref<2x5x4x256xf32, #tpu.memory_space<vmem>>, vector<2x1x4x256xf32>,
    return
  }
  func.func @transform_0(%arg0: i32, %arg1: i32) -> (i32, i32, i32) {
    %c0_i32 = arith.constant 0 : i32
    %c0_i32_0 = arith.constant 0 : i32
    %c0_i32_1 = arith.constant 0 : i32
    %c0_i32_2 = arith.constant 0 : i32
    return %c0_i32, %c0_i32_0, %c0_i32_1 : i32, i32, i32
  }
  func.func @transform_1(%arg0: i32, %arg1: i32) -> (i32, i32, i32) {
    %c0_i32 = arith.constant 0 : i32
    %c0_i32_0 = arith.constant 0 : i32
    return %arg0, %arg1, %c0_i32 : i32, i32, i32
  }
  func.func @transform_2(%arg0: i32, %arg1: i32) -> (i32, i32, i32, i32) {
    %c0_i32 = arith.constant 0 : i32
    %c0_i32_0 = arith.constant 0 : i32
    %c0_i32_1 = arith.constant 0 : i32
    return %arg0, %c0_i32, %arg1, %c0_i32_0 : i32, i32, i32, i32
  }
}

</mosaic_0001>

<llo_original>
// kernel: tpu_custom_call.1
$region0: #{tpu_custom_call.1}
  #allocation0 [shape = 'u32[]', space=smem, size = 0x4, offset = 0x4, fixed_abs, tag = 'smem constant byte address 0x4 - core index']
  #allocation1 [shape = 'u32[144,128]{1,0:T(1,128)}', space=vmem, size = 0x12000, scoped, tag = 'internal scratch']
  %s0 = inlined_call_operand.hbm [shape: s32[2,1,256], index: 0, kind: input, shape index: {}]
  %s1 = inlined_call_operand.hbm [shape: f32[2,4,256], index: 1, kind: input, shape index: {}]
  %s2 = inlined_call_operand.hbm [shape: f32[2,5,4,256], index: 2, kind: output, shape index: {}]
  %s3 = sld [smem:[#allocation0]]
  $region26: #{tpu_custom_call.1} parent=0
    _
  %s5 = ssub.s32 1, %s3
  %s6 = scalar_select 0, %s5, %s3
  $region1: #{tpu_custom_call.1} parent=0
    #allocation2 [shape = 'u8[2048]{0}', space=vmem, size = 0x800, scoped, tag = 'input window, operand 0, single buffered']
    #allocation3 [shape = 's32[1]{0}', space=sflag, size = 0x4, scoped, tag = 'scoped memory for tpu_custom_call.1']
    #allocation4 [shape = 's32[1]{0}', space=sflag, size = 0x4, scoped, tag = 'scoped memory for tpu_custom_call.1']
    #allocation5 [shape = 'u8[8192]{0}', space=vmem, size = 0x2000, scoped, tag = 'input window, operand 1, single buffered']
    #allocation6 [shape = 's32[1]{0}', space=sflag, size = 0x4, scoped, tag = 'scoped memory for tpu_custom_call.1']
    #allocation7 [shape = 'u8[40960]{0}', space=vmem, size = 0xa000, scoped, tag = 'output window, operand 0, single buffered']
    %7 = vsyncpa [#allocation3], 0
    %8 = vsyncpa [#allocation6], 0
    %9 = vsyncpa [#allocation4], 0
    // Predicated region
    $region2: #{tpu_custom_call.1} parent=1 // pred_check
      _
    $region3: #{tpu_custom_call.1} parent=1 // pred_check_branch
      %11 = sbr.rel (0) target = $region5
    $region4: #{tpu_custom_call.1} parent=1 // pred_region
      %s13 = ssub.s32 64, 64
      %14 = vsyncadd [#allocation3], %s13
      %s15 = sshll.u32 [#allocation2], 4
      %s16 = int_to_ptr.vmem [resolvable:$true] %s15
      %21 = dma.hbm_to_vmem [thread:$0]  %s0, 64, %s16, [#allocation3], 32, 32, 2
    $region5: #{tpu_custom_call.1} parent=1 // pred_fallthru
      _
    // Predicated region
    $region6: #{tpu_custom_call.1} parent=1 // pred_check
      _
    $region7: #{tpu_custom_call.1} parent=1 // pred_check_branch
      %23 = sbr.rel (0) target = $region9
    $region8: #{tpu_custom_call.1} parent=1 // pred_region
      %s25 = ssub.s32 256, 256
      %26 = vsyncadd [#allocation6], %s25
      %s27 = sshll.u32 [#allocation5], 4
      %s28 = int_to_ptr.vmem [resolvable:$true] %s27
      %33 = dma.hbm_to_vmem [thread:$0]  %s1, 256, %s28, [#allocation6], 128, 128, 8
    $region9: #{tpu_custom_call.1} parent=1 // pred_fallthru
      _
    // Predicated region
    $region10: #{tpu_custom_call.1} parent=1 // pred_check
      _
    $region11: #{tpu_custom_call.1} parent=1 // pred_check_branch
      %35 = sbr.rel (0) target = $region13
    $region12: #{tpu_custom_call.1} parent=1 // pred_region
      %36 = dma.done [#allocation3], 64
    $region13: #{tpu_custom_call.1} parent=1 // pred_fallthru
      _
    // Predicated region
    $region14: #{tpu_custom_call.1} parent=1 // pred_check
      _
    $region15: #{tpu_custom_call.1} parent=1 // pred_check_branch
      %38 = sbr.rel (0) target = $region17
    $region16: #{tpu_custom_call.1} parent=1 // pred_region
      %39 = dma.done [#allocation6], 256
    $region17: #{tpu_custom_call.1} parent=1 // pred_fallthru
      _
    %v40 = vld [vmem:[#allocation2] sm:$0x3]
    %s41 = scalar_lea.vmem [#allocation2], 2
    %v42 = vld [vmem:[%s41] sm:$0x3]
    %v43 = vld [vmem:[#allocation5] sm:$0xff]
    %v44 = vld [vmem:[#allocation5 + $0x8] sm:$0xff]
    %45 = vst [vmem:[#allocation7] sm:$0xff] %v43
    %46 = vst [vmem:[#allocation7 + $0x28] sm:$0xff] %v44
    %vm47 = vcmp.ge.s32.totalorder %v40, 2
    %vm48 = vcmp.ge.s32.totalorder %v42, 2
    %vm49 = vmand %vm47, %vm48
    %vm50 = vcmp.lt.s32.totalorder %v42, 14
    %vm51 = vmand %vm47, %vm50
    %vm52 = vcmp.lt.s32.totalorder %v40, 14
    %vm53 = vmand %vm52, %vm48
    %vm54 = vmand %vm52, %vm50
    %v57 = vcombine.high %v43, %v43
    %v58 = vcombine.high %v44, %v44
    %61 = vrot.lane.b32.xlu0 %v43, 34
    %v62 = vpop.permute.xlu0 %61
    %63 = vrot.lane.b32.xlu0 %v44, 34
    %v64 = vpop.permute.xlu0 %63
    %65 = vrot.lane.b32.xlu0 %v57, 34
    %v66 = vpop.permute.xlu0 %65
    %67 = vrot.lane.b32.xlu0 %v58, 34
    %v68 = vpop.permute.xlu0 %67
    %v69 = vlaneseq
    %v70 = vand.u32 %v69, 127
    %vm71 = vcmp.lt.s32.totalorder %v70, 34
    %v72 = vsel %vm71, %v62, %v66
    %v73 = vsel %vm71, %v64, %v68
    %v74 = vsel %vm71, %v66, %v62
    %v75 = vsel %vm71, %v68, %v64
    %v76 = vsel %vm49, 1, 0
    %v77 = vlaneseq
    %v78 = vshrl.u32 %v77, 7
    %v79 = vsub.s32 0, %v78
    %v80 = vrot.slane %v76, %v79
    %v81 = vlaneseq
    %v82 = vshrl.u32 %v81, 7
    %v83 = vsub.s32 1, %v82
    %v84 = vrot.slane %v76, %v83
    %vm85 = vcmp.eq.s32.totalorder %v80, 1
    %vm86 = vcmp.eq.s32.totalorder %v84, 1
    %v87 = vsel %vm85, %v74, 0.0
    %v88 = vsel %vm86, %v72, 0.0
    %v89 = vsel %vm85, %v75, 0.0
    %v90 = vsel %vm86, %v73, 0.0
    %v95 = vcombine.low %v87, %v88
    %v96 = vcombine.low %v89, %v90
    %s99 = scalar_lea.vmem [#allocation7], 8
    %100 = vst [vmem:[%s99] sm:$0xff] %v95
    %101 = vst [vmem:[%s99 + $0x28] sm:$0xff] %v96
    %102 = vrot.lane.b32.xlu0 %v43, 30
    %v103 = vpop.permute.xlu0 %102
    %104 = vrot.lane.b32.xlu0 %v44, 30
    %v105 = vpop.permute.xlu0 %104
    %106 = vrot.lane.b32.xlu0 %v57, 30
    %v107 = vpop.permute.xlu0 %106
    %108 = vrot.lane.b32.xlu0 %v58, 30
    %v109 = vpop.permute.xlu0 %108
    %vm110 = vcmp.lt.s32.totalorder %v70, 30
    %v111 = vsel %vm110, %v103, %v107
    %v112 = vsel %vm110, %v105, %v109
    %v113 = vsel %vm110, %v107, %v103
    %v114 = vsel %vm110, %v109, %v105
    %v115 = vsel %vm51, 1, 0
    %v116 = vlaneseq
    %v117 = vshrl.u32 %v116, 7
    %v118 = vsub.s32 0, %v117
    %v119 = vrot.slane %v115, %v118
    %v120 = vlaneseq
    %v121 = vshrl.u32 %v120, 7
    %v122 = vsub.s32 1, %v121
    %v123 = vrot.slane %v115, %v122
    %vm124 = vcmp.eq.s32.totalorder %v119, 1
    %vm125 = vcmp.eq.s32.totalorder %v123, 1
    %v126 = vsel %vm124, %v113, 0.0
    %v127 = vsel %vm125, %v111, 0.0
    %v128 = vsel %vm124, %v114, 0.0
    %v129 = vsel %vm125, %v112, 0.0
    %v134 = vcombine.low %v126, %v127
    %v135 = vcombine.low %v128, %v129
    %s138 = scalar_lea.vmem [#allocation7], 16
    %139 = vst [vmem:[%s138] sm:$0xff] %v134
    %140 = vst [vmem:[%s138 + $0x28] sm:$0xff] %v135
    %141 = vrot.lane.b32.xlu0 %v43, 98
    %v142 = vpop.permute.xlu0 %141
    %143 = vrot.lane.b32.xlu0 %v44, 98
    %v144 = vpop.permute.xlu0 %143
    %145 = vrot.lane.b32.xlu0 %v57, 98
    %v146 = vpop.permute.xlu0 %145
    %147 = vrot.lane.b32.xlu0 %v58, 98
    %v148 = vpop.permute.xlu0 %147
    %vm149 = vcmp.lt.s32.totalorder %v70, 98
    %v150 = vsel %vm149, %v142, %v146
    %v151 = vsel %vm149, %v144, %v148
    %v152 = vsel %vm149, %v146, %v142
    %v153 = vsel %vm149, %v148, %v144
    %v154 = vsel %vm53, 1, 0
    %v155 = vlaneseq
    %v156 = vshrl.u32 %v155, 7
    %v157 = vsub.s32 0, %v156
    %v158 = vrot.slane %v154, %v157
    %v159 = vlaneseq
    %v160 = vshrl.u32 %v159, 7
    %v161 = vsub.s32 1, %v160
    %v162 = vrot.slane %v154, %v161
    %vm163 = vcmp.eq.s32.totalorder %v158, 1
    %vm164 = vcmp.eq.s32.totalorder %v162, 1
    %v165 = vsel %vm163, %v150, 0.0
    %v166 = vsel %vm164, %v152, 0.0
    %v167 = vsel %vm163, %v151, 0.0
    %v168 = vsel %vm164, %v153, 0.0
    %v173 = vcombine.low %v165, %v166
    %v174 = vcombine.low %v167, %v168
    %s177 = scalar_lea.vmem [#allocation7], 24
    %178 = vst [vmem:[%s177] sm:$0xff] %v173
    %179 = vst [vmem:[%s177 + $0x28] sm:$0xff] %v174
    %180 = vrot.lane.b32.xlu0 %v43, 94
    %v181 = vpop.permute.xlu0 %180
    %182 = vrot.lane.b32.xlu0 %v44, 94
    %v183 = vpop.permute.xlu0 %182
    %184 = vrot.lane.b32.xlu0 %v57, 94
    %v185 = vpop.permute.xlu0 %184
    %186 = vrot.lane.b32.xlu0 %v58, 94
    %v187 = vpop.permute.xlu0 %186
    %vm188 = vcmp.lt.s32.totalorder %v70, 94
    %v189 = vsel %vm188, %v181, %v185
    %v190 = vsel %vm188, %v183, %v187
    %v191 = vsel %vm188, %v185, %v181
    %v192 = vsel %vm188, %v187, %v183
    %v193 = vsel %vm54, 1, 0
    %v194 = vlaneseq
    %v195 = vshrl.u32 %v194, 7
    %v196 = vsub.s32 0, %v195
    %v197 = vrot.slane %v193, %v196
    %v198 = vlaneseq
    %v199 = vshrl.u32 %v198, 7
    %v200 = vsub.s32 1, %v199
    %v201 = vrot.slane %v193, %v200
    %vm202 = vcmp.eq.s32.totalorder %v197, 1
    %vm203 = vcmp.eq.s32.totalorder %v201, 1
    %v204 = vsel %vm202, %v189, 0.0
    %v205 = vsel %vm203, %v191, 0.0
    %v206 = vsel %vm202, %v190, 0.0
    %v207 = vsel %vm203, %v192, 0.0
    %v212 = vcombine.low %v204, %v205
    %v213 = vcombine.low %v206, %v207
    %s216 = scalar_lea.vmem [#allocation7], 32
    %217 = vst [vmem:[%s216] sm:$0xff] %v212
    %218 = vst [vmem:[%s216 + $0x28] sm:$0xff] %v213
    // Predicated region
    $region18: #{tpu_custom_call.1} parent=1 // pred_check
      _
    $region19: #{tpu_custom_call.1} parent=1 // pred_check_branch
      %220 = sbr.rel (0) target = $region21
    $region20: #{tpu_custom_call.1} parent=1 // pred_region
      %s222 = ssub.s32 1280, 1280
      %223 = vsyncadd [#allocation4], %s222
      %s224 = sshll.u32 [#allocation7], 4
      %s225 = int_to_ptr.vmem [resolvable:$true] %s224
      %230 = dma.vmem_to_hbm [thread:$0]  %s225, 1280, %s2, [#allocation4], 128, 128, 8
    $region21: #{tpu_custom_call.1} parent=1 // pred_fallthru
      _
    // Predicated region
    $region22: #{tpu_custom_call.1} parent=1 // pred_check
      _
    $region23: #{tpu_custom_call.1} parent=1 // pred_check_branch
      %232 = sbr.rel (0) target = $region25
    $region24: #{tpu_custom_call.1} parent=1 // pred_region
      %233 = dma.done [#allocation4], 1280
    $region25: #{tpu_custom_call.1} parent=1 // pred_fallthru
      _
    %234 = vsyncpa [#allocation3], 1
    %235 = vsyncpa [#allocation6], 1
    %236 = vsyncpa [#allocation4], 1

</llo_original>
